<compile_context>
chip_gen: v5e
topology: v5e:2x2
jax: 0.10.0
libtpu: 0.0.40
codegen_flags: <defaults>
</compile_context>

<pallas_src>
import functools
import math

import numpy as np

import jax
import jax.numpy as jnp
from jax import lax
from jax.experimental import pallas as pl
from jax.experimental.pallas import tpu as pltpu


# ---------------------------------------------------------------------------
# Pallas kernel: in-kernel 3x3 im2col + shared trunk matmul + ReLU, fused
# transposed task-head matmul (lane-dense), per-tile MSE partial sums.
# One grid step = one (image, row-tile) slab of TH output rows.
# ---------------------------------------------------------------------------
def _mtr_kernel(x_ref, w1_ref, b1_ref, wh_ref, bh_ref, t_ref,
                pred_ref, lpart_ref, *,
                th, w_img, n_ht, h_valid, c_tot, needs_mask):
    # ---- in-kernel 3x3 (pad=1) im2col from the halo'd slab ---------------
    # x_ref: (th+2, w+2, cin) bf16.  Slices / concat / reshape are VMEM-local.
    xb = x_ref[...].astype(jnp.float32)
    taps = [xb[dy:dy + th, dx:dx + w_img, :]
            for dy in range(3) for dx in range(3)]
    xcol = jnp.concatenate(taps, axis=-1)                 # (th, w, 9*cin)
    xcol = xcol.reshape(th * w_img, xcol.shape[-1])       # (th*w, 9*cin)
    xcol = xcol.astype(jnp.bfloat16)

    # ---- shared trunk: bf16 matmul, f32 MXU accumulation, bias, ReLU -----
    h = jnp.dot(xcol, w1_ref[...], preferred_element_type=jnp.float32)
    h = jnp.maximum(h + b1_ref[...], 0.0).astype(jnp.bfloat16)  # (th*w, hidden)

    # ---- fused task heads, transposed (lane-dense) orientation -----------
    #   p_t = Wh (c_tot, hidden) . h^T (hidden, th*w) -> (c_tot, th*w)
    p_t = lax.dot_general(wh_ref[...], h,
                          dimension_numbers=(((1,), (1,)), ((), ())),
                          preferred_element_type=jnp.float32)
    p_t = p_t + bh_ref[...]                                # bias: (c_tot, 1)
    pred_ref[...] = p_t                                    # lane-dense store

    # ---- criterion (per-task MSE): lane-reduce partial sums --------------
    d = p_t - t_ref[...].astype(jnp.float32)
    sq = d * d
    if needs_mask:  # static: only emitted when H was padded to a tile multiple
        t_idx = lax.rem(pl.program_id(0), n_ht)

        @pl.when(t_idx == n_ht - 1)        # only the last h-tile pays for it
        def _():
            valid = (h_valid - t_idx * th) * w_img
            col = lax.broadcasted_iota(jnp.int32, sq.shape, 1)
            msq = jnp.where(col < valid, sq, 0.0)
            lpart_ref[...] = jnp.sum(msq, axis=-1,
                                     keepdims=True).reshape(1, c_tot, 1)

        @pl.when(t_idx != n_ht - 1)
        def _():
            lpart_ref[...] = jnp.sum(sq, axis=-1,
                                     keepdims=True).reshape(1, c_tot, 1)
    else:
        lpart_ref[...] = jnp.sum(sq, axis=-1,
                                 keepdims=True).reshape(1, c_tot, 1)


# ---------------------------------------------------------------------------
# JAX glue
# ---------------------------------------------------------------------------
def _round_up(x, mult):
    return ((x + mult - 1) // mult) * mult


def mtr_net_forward(x_nchw, targets, params, *, tile_rows=None):
    """Synthetic MTR_Net mt_step forward path (inference branch).

    x_nchw:  (N, Cin, H, W) float32  (PyTorch NCHW convention)
    targets: dict 'initial'/'final' -> (N, C_task, H, W) float32
    Returns (loss_initial, pred_initial_nchw, loss_final, pred_final_nchw),
    matching mt_step's 4-tuple return.
    """
    n, cin, h, w = x_nchw.shape
    hidden = params["w1"].shape[1]
    ca = params["wa"].shape[1]
    cf = params["wf"].shape[1]
    c_tot = ca + cf
    m_valid = n * h * w

    # ---- tile-height selection -------------------------------------------
    # `unit` is the smallest TH such that TH*W is a multiple of 128 (lane-
    # dense pred/target blocks).  Default aims for ~8 grid steps (v7x dual-TC
    # + pipelining) and caps the streamed slab at ~2 MiB of VMEM.
    unit = 128 // math.gcd(128, w)
    if tile_rows is None:
        tile_rows = max(unit, ((n * h) // 8 // unit) * unit)
    tile_rows = max(unit, (int(tile_rows) // unit) * unit)
    rows_cap = max(unit, ((2 << 20) // max(1, (w + 2) * cin * 2) // unit) * unit)
    tile_rows = min(tile_rows, rows_cap, _round_up(h, unit))
    h_pad = _round_up(h, tile_rows)
    n_ht = h_pad // tile_rows
    total_tiles = n * n_ht
    m_pad = n * h_pad * w
    tile_cols = tile_rows * w
    needs_mask = h_pad != h

    # ---- input: NCHW -> NHWC, bf16 BEFORE padding, halo'd row slabs -------
    x_nhwc = jnp.transpose(x_nchw, (0, 2, 3, 1)).astype(jnp.bfloat16)
    xp = jnp.pad(x_nhwc, ((0, 0), (1, 1 + h_pad - h), (1, 1), (0, 0)))
    slabs = jnp.stack(
        [xp[:, t * tile_rows: t * tile_rows + tile_rows + 2] for t in range(n_ht)],
        axis=1)                                            # (N, n_ht, TH+2, W+2, Cin)
    x_halo = slabs.reshape(total_tiles, tile_rows + 2, w + 2, cin)

    # ---- targets: packed channel-FIRST (c_tot, M) bf16 --------------------
    t_cat = jnp.concatenate([targets["initial"], targets["final"]], axis=1)
    t_t = jnp.transpose(t_cat, (1, 0, 2, 3))               # (c_tot, N, H, W)
    t_t = jnp.pad(t_t, ((0, 0), (0, 0), (0, h_pad - h), (0, 0)))
    t_all = t_t.reshape(c_tot, m_pad).astype(jnp.bfloat16)

    # ---- weights: trunk bf16, fused + transposed heads bf16 ---------------
    w1_bf = params["w1"].astype(jnp.bfloat16)              # (9*Cin, hidden)
    b1 = params["b1"].astype(jnp.float32)                  # (1, hidden)
    wh_t = jnp.concatenate([params["wa"].T, params["wf"].T],
                           axis=0).astype(jnp.bfloat16)    # (c_tot, hidden)
    bh_t = jnp.concatenate([params["ba"], params["bf"]],
                           axis=1).T.astype(jnp.float32)   # (c_tot, 1)

    kernel = functools.partial(_mtr_kernel, th=tile_rows, w_img=w, n_ht=n_ht,
                               h_valid=h, c_tot=c_tot, needs_mask=needs_mask)

    preds_t, lparts = pl.pallas_call(
        kernel,
        out_shape=(
            jax.ShapeDtypeStruct((c_tot, m_pad), jnp.float32),      # packed preds
            jax.ShapeDtypeStruct((total_tiles, c_tot, 1), jnp.float32),  # loss partials
        ),
        grid=(total_tiles,),
        in_specs=[
            pl.BlockSpec((None, tile_rows + 2, w + 2, cin),
                         lambda i: (i, 0, 0, 0)),           # halo'd slab (streamed)
            pl.BlockSpec((9 * cin, hidden), lambda i: (0, 0)),   # w1   (resident)
            pl.BlockSpec((1, hidden), lambda i: (0, 0)),         # b1
            pl.BlockSpec((c_tot, hidden), lambda i: (0, 0)),     # fused head weights^T
            pl.BlockSpec((c_tot, 1), lambda i: (0, 0)),          # fused head bias^T
            pl.BlockSpec((c_tot, tile_cols), lambda i: (0, i)),  # targets (streamed)
        ],
        out_specs=(
            pl.BlockSpec((c_tot, tile_cols), lambda i: (0, i)),  # preds (lane-dense)
            pl.BlockSpec((1, c_tot, 1), lambda i: (i, 0, 0)),    # per-tile loss sums
        ),
        compiler_params=pltpu.CompilerParams(
            dimension_semantics=("parallel",),   # no cross-tile dependency
            vmem_limit_bytes=32 * 1024 * 1024,
        ),
    )(x_halo, w1_bf, b1, wh_t, bh_t, t_all)

    # ---- unpack predictions back to NCHW -----------------------------------
    preds_r = preds_t.reshape(c_tot, n, h_pad, w)[:, :, :h, :]
    pred_initial = jnp.transpose(preds_r[:ca], (1, 0, 2, 3))
    pred_final = jnp.transpose(preds_r[ca:], (1, 0, 2, 3))

    # ---- final reduce + single normalization (mean over valid elements) ----
    sums = jnp.sum(lparts[:, :, 0], axis=0)                # (c_tot,)
    loss_initial = jnp.sum(sums[:ca]) / (m_valid * ca)
    loss_final = jnp.sum(sums[ca:]) / (m_valid * cf)
    # losses['total'] = loss_initial + loss_final is only used for backward in
    # the PyTorch wrapper; not part of mt_step's returned tuple.
    return loss_initial, pred_initial, loss_final, pred_final


def _im2col_3x3(x_nhwc):
    """3x3, pad=1 im2col.  x_nhwc: (N, H, W, C) -> (N*H*W, 9*C)."""
    n, h, w, c = x_nhwc.shape
    xp = jnp.pad(x_nhwc, ((0, 0), (1, 1), (1, 1), (0, 0)))
    taps = []
    for dy in range(3):
        for dx in range(3):
            taps.append(xp[:, dy:dy + h, dx:dx + w, :])
    return jnp.concatenate(taps, axis=-1).reshape(n * h * w, 9 * c)


def _reference_forward(x_nchw, targets, params):
    """Pure-JAX f32 reference of the same forward path (for validation)."""
    n, cin, h, w = x_nchw.shape
    ca = params["wa"].shape[1]
    cf = params["wf"].shape[1]
    m = n * h * w
    x_nhwc = jnp.transpose(x_nchw, (0, 2, 3, 1))
    xcol = _im2col_3x3(x_nhwc)
    hid = jnp.maximum(xcol @ params["w1"] + params["b1"], 0.0)
    pa = hid @ params["wa"] + params["ba"]
    pf = hid @ params["wf"] + params["bf"]
    ta = jnp.transpose(targets["initial"], (0, 2, 3, 1)).reshape(m, ca)
    tf = jnp.transpose(targets["final"], (0, 2, 3, 1)).reshape(m, cf)
    la = jnp.mean((pa - ta) ** 2)
    lf = jnp.mean((pf - tf) ** 2)
    pred_i = jnp.transpose(pa.reshape(n, h, w, ca), (0, 3, 1, 2))
    pred_f = jnp.transpose(pf.reshape(n, h, w, cf), (0, 3, 1, 2))
    return la, pred_i, lf, pred_f


def init_params(key, cin=4, hidden=32, ca=1, cf=1):
    k1, k2, k3 = jax.random.split(key, 3)
    scale1 = 1.0 / jnp.sqrt(9.0 * cin)
    scale2 = 1.0 / jnp.sqrt(float(hidden))
    return {
        "w1": (jax.random.normal(k1, (9 * cin, hidden), jnp.float32) * scale1),
        "b1": jnp.zeros((1, hidden), jnp.float32),
        "wa": (jax.random.normal(k2, (hidden, ca), jnp.float32) * scale2),
        "ba": jnp.zeros((1, ca), jnp.float32),
        "wf": (jax.random.normal(k3, (hidden, cf), jnp.float32) * scale2),
        "bf": jnp.zeros((1, cf), jnp.float32),
    }


if __name__ == "__main__":
    key = jax.random.PRNGKey(0)
    kx, kta, ktf, kp = jax.random.split(key, 4)

    N, CIN, H, W = 2, 4, 16, 16
    x = jax.random.normal(kx, (N, CIN, H, W), jnp.float32)
    targets = {
        "initial": jax.random.normal(kta, (N, 1, H, W), jnp.float32),
        "final": jax.random.normal(ktf, (N, 1, H, W), jnp.float32),
    }
    params = init_params(kp, cin=CIN, hidden=32, ca=1, cf=1)

    # tile_rows=8 -> 2 row-tiles per image x 2 images = 4 grid steps, each with
    # a lane-dense 128-column pred/target block; exercises the pipelined path.
    fwd = jax.jit(functools.partial(mtr_net_forward, tile_rows=8))
    loss_i, pred_i, loss_f, pred_f = fwd(x, targets, params)
    jax.block_until_ready((loss_i, pred_i, loss_f, pred_f))

    assert pred_i.shape == (N, 1, H, W) and pred_f.shape == (N, 1, H, W)
    assert bool(jnp.isfinite(loss_i)) and bool(jnp.isfinite(loss_f))

    # Validate against the pure-JAX f32 reference (bf16 streams -> relaxed tol).
    rla, rpi, rlf, rpf = _reference_forward(x, targets, params)
    np.testing.assert_allclose(np.asarray(loss_i), np.asarray(rla),
                               rtol=5e-2, atol=2e-2)
    np.testing.assert_allclose(np.asarray(loss_f), np.asarray(rlf),
                               rtol=5e-2, atol=2e-2)
    np.testing.assert_allclose(np.asarray(pred_i), np.asarray(rpi),
                               rtol=5e-2, atol=5e-2)
    np.testing.assert_allclose(np.asarray(pred_f), np.asarray(rpf),
                               rtol=5e-2, atol=5e-2)

    print("KERNEL_OK")
</pallas_src>

<mosaic_0001>
module attributes {stable_mosaic.version = 11 : i64} {
  func.func @_mtr_kernel(%arg0: i32, %arg1: memref<1x10x18x4xbf16, #tpu.memory_space<vmem>>, %arg2: memref<36x32xbf16, #tpu.memory_space<vmem>>, %arg3: memref<1x32xf32, #tpu.memory_space<vmem>>, %arg4: memref<2x32xbf16, #tpu.memory_space<vmem>>, %arg5: memref<2x1xf32, #tpu.memory_space<vmem>>, %arg6: memref<2x128xbf16, #tpu.memory_space<vmem>>, %arg7: memref<2x128xf32, #tpu.memory_space<vmem>>, %arg8: memref<1x2x1xf32, #tpu.memory_space<vmem>>) attributes {dimension_semantics = [#tpu.dimension_semantics<parallel>], iteration_bounds = array<i64: 4>, scalar_prefetch = 0 : i64, scratch_operands = 0 : i64, tpu.core_type = #tpu.core_type<tc>, window_params = [{transform_indices = @transform_0, window_bounds = array<i64: 1, 10, 18, 4>}, {pipeline_mode = #tpu.pipeline_mode<synchronous>, transform_indices = @transform_1, window_bounds = array<i64: 36, 32>}, {pipeline_mode = #tpu.pipeline_mode<synchronous>, transform_indices = @transform_2, window_bounds = array<i64: 1, 32>}, {pipeline_mode = #tpu.pipeline_mode<synchronous>, transform_indices = @transform_3, window_bounds = array<i64: 2, 32>}, {pipeline_mode = #tpu.pipeline_mode<synchronous>, transform_indices = @transform_4, window_bounds = array<i64: 2, 1>}, {transform_indices = @transform_5, window_bounds = array<i64: 2, 128>}, {transform_indices = @transform_6, window_bounds = array<i64: 2, 128>}, {transform_indices = @transform_7, window_bounds = array<i64: 1, 2, 1>}]} {
    %c0 = arith.constant 0 : index
    %c0_0 = arith.constant 0 : index
    %c0_1 = arith.constant 0 : index
    %c0_2 = arith.constant 0 : index
    %0 = vector.load %arg1[%c0, %c0_0, %c0_1, %c0_2] : memref<1x10x18x4xbf16, #tpu.memory_space<vmem>>, vector<1x10x18x4xbf16>
    %1 = vector.shape_cast %0 : vector<1x10x18x4xbf16> to vector<10x18x4xbf16>
    %2 = arith.extf %1 : vector<10x18x4xbf16> to vector<10x18x4xf32>
    %3 = vector.extract_strided_slice %2 {offsets = [0, 0, 0], sizes = [8, 16, 4], strides = [1, 1, 1]} : vector<10x18x4xf32> to vector<8x16x4xf32>
    %4 = vector.extract_strided_slice %2 {offsets = [0, 1, 0], sizes = [8, 16, 4], strides = [1, 1, 1]} : vector<10x18x4xf32> to vector<8x16x4xf32>
    %5 = vector.extract_strided_slice %2 {offsets = [0, 2, 0], sizes = [8, 16, 4], strides = [1, 1, 1]} : vector<10x18x4xf32> to vector<8x16x4xf32>
    %6 = vector.extract_strided_slice %2 {offsets = [1, 0, 0], sizes = [8, 16, 4], strides = [1, 1, 1]} : vector<10x18x4xf32> to vector<8x16x4xf32>
    %7 = vector.extract_strided_slice %2 {offsets = [1, 1, 0], sizes = [8, 16, 4], strides = [1, 1, 1]} : vector<10x18x4xf32> to vector<8x16x4xf32>
    %8 = vector.extract_strided_slice %2 {offsets = [1, 2, 0], sizes = [8, 16, 4], strides = [1, 1, 1]} : vector<10x18x4xf32> to vector<8x16x4xf32>
    %9 = vector.extract_strided_slice %2 {offsets = [2, 0, 0], sizes = [8, 16, 4], strides = [1, 1, 1]} : vector<10x18x4xf32> to vector<8x16x4xf32>
    %10 = vector.extract_strided_slice %2 {offsets = [2, 1, 0], sizes = [8, 16, 4], strides = [1, 1, 1]} : vector<10x18x4xf32> to vector<8x16x4xf32>
    %11 = vector.extract_strided_slice %2 {offsets = [2, 2, 0], sizes = [8, 16, 4], strides = [1, 1, 1]} : vector<10x18x4xf32> to vector<8x16x4xf32>
    %12 = tpu.concatenate %3, %4, %5, %6, %7, %8, %9, %10, %11 in 2 : vector<8x16x4xf32>, vector<8x16x4xf32>, vector<8x16x4xf32>, vector<8x16x4xf32>, vector<8x16x4xf32>, vector<8x16x4xf32>, vector<8x16x4xf32>, vector<8x16x4xf32>, vector<8x16x4xf32> -> vector<8x16x36xf32>
    %13 = vector.shape_cast %12 : vector<8x16x36xf32> to vector<128x36xf32>
    %14 = arith.truncf %13 : vector<128x36xf32> to vector<128x36xbf16>
    %c0_3 = arith.constant 0 : index
    %c0_4 = arith.constant 0 : index
    %15 = vector.load %arg2[%c0_3, %c0_4] : memref<36x32xbf16, #tpu.memory_space<vmem>>, vector<36x32xbf16>
    %cst = arith.constant dense<0.000000e+00> : vector<128x32xf32>
    %16 = tpu.matmul %14, %15, %cst {dimension_numbers = #tpu.dot_dimension_numbers<[1], [0], [0], [1], [0, 0, 1, 1], [], []>} : vector<128x36xbf16>, vector<36x32xbf16>, vector<128x32xf32> -> vector<128x32xf32>
    %c0_5 = arith.constant 0 : index
    %c0_6 = arith.constant 0 : index
    %17 = vector.load %arg3[%c0_5, %c0_6] : memref<1x32xf32, #tpu.memory_space<vmem>>, vector<1x32xf32>
    %18 = vector.broadcast %17 : vector<1x32xf32> to vector<128x32xf32>
    %19 = arith.addf %16, %18 : vector<128x32xf32>
    %cst_7 = arith.constant 0.000000e+00 : f32
    %20 = vector.broadcast %cst_7 : f32 to vector<128x32xf32>
    %21 = arith.maximumf %19, %20 : vector<128x32xf32>
    %22 = arith.truncf %21 : vector<128x32xf32> to vector<128x32xbf16>
    %c0_8 = arith.constant 0 : index
    %c0_9 = arith.constant 0 : index
    %23 = vector.load %arg4[%c0_8, %c0_9] : memref<2x32xbf16, #tpu.memory_space<vmem>>, vector<2x32xbf16>
    %cst_10 = arith.constant dense<0.000000e+00> : vector<2x128xf32>
    %24 = tpu.matmul %23, %22, %cst_10 {dimension_numbers = #tpu.dot_dimension_numbers<[1], [1], [0], [0], [0, 0, 1, 0], [], []>} : vector<2x32xbf16>, vector<128x32xbf16>, vector<2x128xf32> -> vector<2x128xf32>
    %c0_11 = arith.constant 0 : index
    %c0_12 = arith.constant 0 : index
    %25 = vector.load %arg5[%c0_11, %c0_12] : memref<2x1xf32, #tpu.memory_space<vmem>>, vector<2x1xf32>
    %26 = vector.broadcast %25 : vector<2x1xf32> to vector<2x128xf32>
    %27 = arith.addf %24, %26 : vector<2x128xf32>
    %c0_13 = arith.constant 0 : index
    %c0_14 = arith.constant 0 : index
    %28 = vector.load %arg7[%c0_13, %c0_14] : memref<2x128xf32, #tpu.memory_space<vmem>>, vector<2x128xf32>
    tpu.vector_store %arg7[%c0_13, %c0_14], %27 {strides = array<i32>} : memref<2x128xf32, #tpu.memory_space<vmem>>, vector<2x128xf32>,
    %c0_15 = arith.constant 0 : index
    %c0_16 = arith.constant 0 : index
    %29 = vector.load %arg6[%c0_15, %c0_16] : memref<2x128xbf16, #tpu.memory_space<vmem>>, vector<2x128xbf16>
    %30 = arith.extf %29 : vector<2x128xbf16> to vector<2x128xf32>
    %31 = arith.subf %27, %30 : vector<2x128xf32>
    %32 = arith.mulf %31, %31 : vector<2x128xf32>
    %cst_17 = arith.constant dense<0.000000e+00> : vector<2xf32>
    %33 = vector.multi_reduction <add>, %32, %cst_17 [1] : vector<2x128xf32> to vector<2xf32>
    %34 = vector.shape_cast %33 : vector<2xf32> to vector<2x1xf32>
    %35 = vector.shape_cast %34 : vector<2x1xf32> to vector<1x2x1xf32>
    %c0_18 = arith.constant 0 : index
    %c0_19 = arith.constant 0 : index
    %c0_20 = arith.constant 0 : index
    %36 = vector.load %arg8[%c0_18, %c0_19, %c0_20] : memref<1x2x1xf32, #tpu.memory_space<vmem>>, vector<1x2x1xf32>
    tpu.vector_store %arg8[%c0_18, %c0_19, %c0_20], %35 {strides = array<i32>} : memref<1x2x1xf32, #tpu.memory_space<vmem>>, vector<1x2x1xf32>,
    return
  }
  func.func @transform_0(%arg0: i32) -> (i32, i32, i32, i32) {
    %c0_i32 = arith.constant 0 : i32
    %c0_i32_0 = arith.constant 0 : i32
    %c0_i32_1 = arith.constant 0 : i32
    %c0_i32_2 = arith.constant 0 : i32
    return %arg0, %c0_i32, %c0_i32_0, %c0_i32_1 : i32, i32, i32, i32
  }
  func.func @transform_1(%arg0: i32) -> (i32, i32) {
    %c0_i32 = arith.constant 0 : i32
    %c0_i32_0 = arith.constant 0 : i32
    %c0_i32_1 = arith.constant 0 : i32
    return %c0_i32, %c0_i32_0 : i32, i32
  }
  func.func @transform_2(%arg0: i32) -> (i32, i32) {
    %c0_i32 = arith.constant 0 : i32
    %c0_i32_0 = arith.constant 0 : i32
    %c0_i32_1 = arith.constant 0 : i32
    return %c0_i32, %c0_i32_0 : i32, i32
  }
  func.func @transform_3(%arg0: i32) -> (i32, i32) {
    %c0_i32 = arith.constant 0 : i32
    %c0_i32_0 = arith.constant 0 : i32
    %c0_i32_1 = arith.constant 0 : i32
    return %c0_i32, %c0_i32_0 : i32, i32
  }
  func.func @transform_4(%arg0: i32) -> (i32, i32) {
    %c0_i32 = arith.constant 0 : i32
    %c0_i32_0 = arith.constant 0 : i32
    %c0_i32_1 = arith.constant 0 : i32
    return %c0_i32, %c0_i32_0 : i32, i32
  }
  func.func @transform_5(%arg0: i32) -> (i32, i32) {
    %c0_i32 = arith.constant 0 : i32
    %c0_i32_0 = arith.constant 0 : i32
    return %c0_i32, %arg0 : i32, i32
  }
  func.func @transform_6(%arg0: i32) -> (i32, i32) {
    %c0_i32 = arith.constant 0 : i32
    %c0_i32_0 = arith.constant 0 : i32
    return %c0_i32, %arg0 : i32, i32
  }
  func.func @transform_7(%arg0: i32) -> (i32, i32, i32) {
    %c0_i32 = arith.constant 0 : i32
    %c0_i32_0 = arith.constant 0 : i32
    %c0_i32_1 = arith.constant 0 : i32
    return %arg0, %c0_i32, %c0_i32_0 : i32, i32, i32
  }
}

</mosaic_0001>

<llo_original>
// kernel: mtr_net_forward.1
$region0: #{mtr_net_forward.1}
  #allocation0 [shape = 'u32[]', space=smem, size = 0x4, offset = 0x4, fixed_abs, tag = 'smem constant byte address 0x4 - core index']
  #allocation1 [shape = 'u32[72,128]{1,0:T(1,128)}', space=vmem, size = 0x9000, scoped, tag = 'internal scratch']
  %s0 = inlined_call_operand.vmem [shape: bf16[4,10,18,4], index: 0, kind: input, shape index: {}]
  %s1 = inlined_call_operand.vmem [shape: bf16[36,32], index: 1, kind: input, shape index: {}]
  %s2 = inlined_call_operand.vmem [shape: f32[1,32], index: 2, kind: input, shape index: {}]
  %s3 = inlined_call_operand.vmem [shape: bf16[2,32], index: 3, kind: input, shape index: {}]
  %s4 = inlined_call_operand.vmem [shape: f32[2,1], index: 4, kind: input, shape index: {}]
  %s5 = inlined_call_operand.vmem [shape: bf16[2,512], index: 5, kind: input, shape index: {}]
  %s6 = inlined_call_operand.vmem [shape: f32[2,512], index: 6, kind: output, shape index: {0}]
  %s7 = inlined_call_operand.vmem [shape: f32[4,2,1], index: 7, kind: output, shape index: {1}]
  %8 = xla_tuple %s6, %s7
  %s9 = sld [smem:[#allocation0]]
  $region65: #{mtr_net_forward.1} parent=0
    _
  %s11 = ssub.s32 1, %s9
  %s12 = scalar_select 0, %s11, %s9
  loop: start=0, step=1, limit=6
  $region2: #{mtr_net_forward.1} parent=0 // loop_pre_header
    _
  $region3: #{mtr_net_forward.1} parent=0 // loop_header
    %s14 = sphi 0, %s18
    %p15 = scmp.ge.s32.totalorder %s14, 6
    %s24 = sphi 0, %s26
    %s27 = sphi 0, %s24
    %s28 = sphi 0, %s27
    %s44 = sphi 0, %s28
    %s48 = sphi 0, %s48
    %s50 = sphi 0, %s48
    %s51 = sphi 0, %s50
    %s65 = sphi 0, %s51
    %s69 = sphi 0, %s69
    %s71 = sphi 0, %s69
    %s72 = sphi 0, %s71
    %s86 = sphi 0, %s72
    %s90 = sphi 0, %s90
    %s92 = sphi 0, %s90
    %s93 = sphi 0, %s92
    %s107 = sphi 0, %s93
    %s111 = sphi 0, %s111
    %s113 = sphi 0, %s111
    %s114 = sphi 0, %s113
    %s128 = sphi 0, %s114
    %s134 = sphi 0, %s136
    %s137 = sphi 0, %s134
    %s138 = sphi 0, %s137
    %s154 = sphi 0, %s138
    %s160 = sphi 0, %s162
    %s163 = sphi 0, %s160
    %s164 = sphi 0, %s163
    %s180 = sphi 0, %s164
    %s186 = sphi 0, %s188
    %s189 = sphi 0, %s186
    %s190 = sphi 0, %s189
    %s206 = sphi 0, %s190
  $region4: #{mtr_net_forward.1} parent=0 // loop_header_branch
    %17 = sbr.rel (%p15) target = $region8
  $region5: #{mtr_net_forward.1} parent=0 // loop_body
    %s19 = ssub.s32 %s14, 1
    %s20 = ssub.s32 %s14, 2
    %s21 = sadd.s32 %s14, 1
    %s22 = ssub.s32 %s14, %s21
    %p23 = scmp.eq.s32.totalorder %s22, 0
    %s25 = sadd.s32 %s24, 1
    %s26 = scalar_select %p23, %s24, %s25
    %p29 = pneg %p23
    %p30 = scmp.eq.s32.totalorder %s14, 3
    %p31 = por %p29, %p30
    %p32 = scmp.ne.s32.totalorder %s24, %s27
    %p33 = scmp.eq.s32.totalorder %s14, 0
    %p34 = por %p32, %p33
    %p35 = scmp.ne.s32.totalorder %s24, %s27
    %p36 = scmp.eq.s32.totalorder %s19, 3
    %p37 = por %p35, %p36
    %p38 = scmp.ne.s32.totalorder %s27, %s28
    %p39 = scmp.eq.s32.totalorder %s19, 0
    %p40 = por %p38, %p39
    %p41 = scmp.ne.s32.totalorder %s27, %s28
    %p42 = scmp.eq.s32.totalorder %s20, 3
    %p43 = por %p41, %p42
    %p45 = scmp.ne.s32.totalorder %s28, %s44
    %p46 = scmp.eq.s32.totalorder %s20, 0
    %p47 = por %p45, %p46
    %s49 = sadd.s32 %s48, 1
    %p52 = scmp.eq.s32.totalorder %s14, 3
    %p53 = scmp.ne.s32.totalorder %s48, %s50
    %p54 = scmp.eq.s32.totalorder %s14, 0
    %p55 = por %p53, %p54
    %p56 = scmp.ne.s32.totalorder %s48, %s50
    %p57 = scmp.eq.s32.totalorder %s19, 3
    %p58 = por %p56, %p57
    %p59 = scmp.ne.s32.totalorder %s50, %s51
    %p60 = scmp.eq.s32.totalorder %s19, 0
    %p61 = por %p59, %p60
    %p62 = scmp.ne.s32.totalorder %s50, %s51
    %p63 = scmp.eq.s32.totalorder %s20, 3
    %p64 = por %p62, %p63
    %p66 = scmp.ne.s32.totalorder %s51, %s65
    %p67 = scmp.eq.s32.totalorder %s20, 0
    %p68 = por %p66, %p67
    %s70 = sadd.s32 %s69, 1
    %p73 = scmp.eq.s32.totalorder %s14, 3
    %p74 = scmp.ne.s32.totalorder %s69, %s71
    %p75 = scmp.eq.s32.totalorder %s14, 0
    %p76 = por %p74, %p75
    %p77 = scmp.ne.s32.totalorder %s69, %s71
    %p78 = scmp.eq.s32.totalorder %s19, 3
    %p79 = por %p77, %p78
    %p80 = scmp.ne.s32.totalorder %s71, %s72
    %p81 = scmp.eq.s32.totalorder %s19, 0
    %p82 = por %p80, %p81
    %p83 = scmp.ne.s32.totalorder %s71, %s72
    %p84 = scmp.eq.s32.totalorder %s20, 3
    %p85 = por %p83, %p84
    %p87 = scmp.ne.s32.totalorder %s72, %s86
    %p88 = scmp.eq.s32.totalorder %s20, 0
    %p89 = por %p87, %p88
    %s91 = sadd.s32 %s90, 1
    %p94 = scmp.eq.s32.totalorder %s14, 3
    %p95 = scmp.ne.s32.totalorder %s90, %s92
    %p96 = scmp.eq.s32.totalorder %s14, 0
    %p97 = por %p95, %p96
    %p98 = scmp.ne.s32.totalorder %s90, %s92
    %p99 = scmp.eq.s32.totalorder %s19, 3
    %p100 = por %p98, %p99
    %p101 = scmp.ne.s32.totalorder %s92, %s93
    %p102 = scmp.eq.s32.totalorder %s19, 0
    %p103 = por %p101, %p102
    %p104 = scmp.ne.s32.totalorder %s92, %s93
    %p105 = scmp.eq.s32.totalorder %s20, 3
    %p106 = por %p104, %p105
    %p108 = scmp.ne.s32.totalorder %s93, %s107
    %p109 = scmp.eq.s32.totalorder %s20, 0
    %p110 = por %p108, %p109
    %s112 = sadd.s32 %s111, 1
    %p115 = scmp.eq.s32.totalorder %s14, 3
    %p116 = scmp.ne.s32.totalorder %s111, %s113
    %p117 = scmp.eq.s32.totalorder %s14, 0
    %p118 = por %p116, %p117
    %p119 = scmp.ne.s32.totalorder %s111, %s113
    %p120 = scmp.eq.s32.totalorder %s19, 3
    %p121 = por %p119, %p120
    %p122 = scmp.ne.s32.totalorder %s113, %s114
    %p123 = scmp.eq.s32.totalorder %s19, 0
    %p124 = por %p122, %p123
    %p125 = scmp.ne.s32.totalorder %s113, %s114
    %p126 = scmp.eq.s32.totalorder %s20, 3
    %p127 = por %p125, %p126
    %p129 = scmp.ne.s32.totalorder %s114, %s128
    %p130 = scmp.eq.s32.totalorder %s20, 0
    %p131 = por %p129, %p130
    %s132 = ssub.s32 %s14, %s21
    %p133 = scmp.eq.s32.totalorder %s132, 0
    %s135 = sadd.s32 %s134, 1
    %s136 = scalar_select %p133, %s134, %s135
    %p139 = pneg %p133
    %p140 = scmp.eq.s32.totalorder %s14, 3
    %p141 = por %p139, %p140
    %p142 = scmp.ne.s32.totalorder %s134, %s137
    %p143 = scmp.eq.s32.totalorder %s14, 0
    %p144 = por %p142, %p143
    %p145 = scmp.ne.s32.totalorder %s134, %s137
    %p146 = scmp.eq.s32.totalorder %s19, 3
    %p147 = por %p145, %p146
    %p148 = scmp.ne.s32.totalorder %s137, %s138
    %p149 = scmp.eq.s32.totalorder %s19, 0
    %p150 = por %p148, %p149
    %p151 = scmp.ne.s32.totalorder %s137, %s138
    %p152 = scmp.eq.s32.totalorder %s20, 3
    %p153 = por %p151, %p152
    %p155 = scmp.ne.s32.totalorder %s138, %s154
    %p156 = scmp.eq.s32.totalorder %s20, 0
    %p157 = por %p155, %p156
    %s158 = ssub.s32 %s14, %s21
    %p159 = scmp.eq.s32.totalorder %s158, 0
    %s161 = sadd.s32 %s160, 1
    %s162 = scalar_select %p159, %s160, %s161
    %p165 = pneg %p159
    %p166 = scmp.eq.s32.totalorder %s14, 3
    %p167 = por %p165, %p166
    %p168 = scmp.ne.s32.totalorder %s160, %s163
    %p169 = scmp.eq.s32.totalorder %s14, 0
    %p170 = por %p168, %p169
    %p171 = scmp.ne.s32.totalorder %s160, %s163
    %p172 = scmp.eq.s32.totalorder %s19, 3
    %p173 = por %p171, %p172
    %p174 = scmp.ne.s32.totalorder %s163, %s164
    %p175 = scmp.eq.s32.totalorder %s19, 0
    %p176 = por %p174, %p175
    %p177 = scmp.ne.s32.totalorder %s163, %s164
    %p178 = scmp.eq.s32.totalorder %s20, 3
    %p179 = por %p177, %p178
    %p181 = scmp.ne.s32.totalorder %s164, %s180
    %p182 = scmp.eq.s32.totalorder %s20, 0
    %p183 = por %p181, %p182
    %s184 = ssub.s32 %s14, %s21
    %p185 = scmp.eq.s32.totalorder %s184, 0
    %s187 = sadd.s32 %s186, 1
    %s188 = scalar_select %p185, %s186, %s187
    %p191 = pneg %p185
    %p192 = scmp.eq.s32.totalorder %s14, 3
    %p193 = por %p191, %p192
    %p194 = scmp.ne.s32.totalorder %s186, %s189
    %p195 = scmp.eq.s32.totalorder %s14, 0
    %p196 = por %p194, %p195
    %p197 = scmp.ne.s32.totalorder %s186, %s189
    %p198 = scmp.eq.s32.totalorder %s19, 3
    %p199 = por %p197, %p198
    %p200 = scmp.ne.s32.totalorder %s189, %s190
    %p201 = scmp.eq.s32.totalorder %s19, 0
    %p202 = por %p200, %p201
    %p203 = scmp.ne.s32.totalorder %s189, %s190
    %p204 = scmp.eq.s32.totalorder %s20, 3
    %p205 = por %p203, %p204
    %p207 = scmp.ne.s32.totalorder %s190, %s206
    %p208 = scmp.eq.s32.totalorder %s20, 0
    %p209 = por %p207, %p208
    %p210 = scmp.le.s32.totalorder 1, %s14
    %p211 = scmp.lt.s32.totalorder %s14, 5
    %p212 = pnand %p210, %p211
    %p213 = pneg %p212
    // Predicated region
    $region9: #{mtr_net_forward.1} parent=5 // pred_check
      _
    $region10: #{mtr_net_forward.1} parent=5 // pred_check_branch
      %215 = sbr.rel (%p212) target = $region12
    $region11: #{mtr_net_forward.1} parent=5 // pred_region
      %s216 = ssub.s32 %s14, 1
      // Predicated region
      $region13: #{mtr_net_forward.1} parent=11 // pred_check
        %p217 = pneg %p61
      $region14: #{mtr_net_forward.1} parent=11 // pred_check_branch
        %219 = sbr.rel (%p217) target = $region16
      $region15: #{mtr_net_forward.1} parent=11 // pred_region
        _
      $region16: #{mtr_net_forward.1} parent=11 // pred_fallthru
        _
      // Predicated region
      $region17: #{mtr_net_forward.1} parent=11 // pred_check
        %p220 = pneg %p82
      $region18: #{mtr_net_forward.1} parent=11 // pred_check_branch
        %222 = sbr.rel (%p220) target = $region20
      $region19: #{mtr_net_forward.1} parent=11 // pred_region
        _
      $region20: #{mtr_net_forward.1} parent=11 // pred_fallthru
        _
      // Predicated region
      $region21: #{mtr_net_forward.1} parent=11 // pred_check
        %p223 = pneg %p103
      $region22: #{mtr_net_forward.1} parent=11 // pred_check_branch
        %225 = sbr.rel (%p223) target = $region24
      $region23: #{mtr_net_forward.1} parent=11 // pred_region
        _
      $region24: #{mtr_net_forward.1} parent=11 // pred_fallthru
        _
      // Predicated region
      $region25: #{mtr_net_forward.1} parent=11 // pred_check
        %p226 = pneg %p124
      $region26: #{mtr_net_forward.1} parent=11 // pred_check_branch
        %228 = sbr.rel (%p226) target = $region28
      $region27: #{mtr_net_forward.1} parent=11 // pred_region
        _
      $region28: #{mtr_net_forward.1} parent=11 // pred_fallthru
        _
    $region12: #{mtr_net_forward.1} parent=5 // pred_fallthru
      _
    %p229 = scmp.lt.s32.totalorder %s14, 4
    // Predicated region
    $region29: #{mtr_net_forward.1} parent=5 // pred_check
      %p230 = pneg %p229
    $region30: #{mtr_net_forward.1} parent=5 // pred_check_branch
      %232 = sbr.rel (%p230) target = $region32
    $region31: #{mtr_net_forward.1} parent=5 // pred_region
      // Predicated region
      $region33: #{mtr_net_forward.1} parent=31 // pred_check
        %p233 = pneg %p34
      $region34: #{mtr_net_forward.1} parent=31 // pred_check_branch
        %235 = sbr.rel (%p233) target = $region36
      $region35: #{mtr_net_forward.1} parent=31 // pred_region
        %p236 = scmp.lt.s32.totalorder %s14, 3
        %s237 = scalar_select %p236, %s14, 3
        %s238 = smul.addr %s237, 30
        %s239 = smul.addr %s238, 4
        %s240 = scalar_lea.vmem %s0, %s239
      $region36: #{mtr_net_forward.1} parent=31 // pred_fallthru
        _
      // Predicated region
      $region37: #{mtr_net_forward.1} parent=31 // pred_check
        %p241 = pneg %p144
      $region38: #{mtr_net_forward.1} parent=31 // pred_check_branch
        %243 = sbr.rel (%p241) target = $region40
      $region39: #{mtr_net_forward.1} parent=31 // pred_region
        %p244 = scmp.lt.s32.totalorder %s14, 3
        %s245 = scalar_select %p244, %s14, 3
        %s246 = scalar_lea.vmem %s5, %s245
      $region40: #{mtr_net_forward.1} parent=31 // pred_fallthru
        _
    $region32: #{mtr_net_forward.1} parent=5 // pred_fallthru
      _
    %p247 = scmp.le.s32.totalorder 1, %s14
    %p248 = scmp.lt.s32.totalorder %s14, 5
    %p249 = pnand %p247, %p248
    %p250 = pneg %p249
    // Predicated region
    $region41: #{mtr_net_forward.1} parent=5 // pred_check
      _
    $region42: #{mtr_net_forward.1} parent=5 // pred_check_branch
      %252 = sbr.rel (%p249) target = $region44
    $region43: #{mtr_net_forward.1} parent=5 // pred_region
      %s253 = ssub.s32 %s14, 1
      %p254 = scmp.lt.s32.totalorder %s19, 3
      %s255 = scalar_select %p254, %s19, 3
      %s256 = smul.addr %s255, 30
      %s257 = smul.addr %s256, 4
      %s258 = scalar_lea.vmem %s0, %s257
      %p259 = pneg %p40
      %p260 = pneg %p37
      %p261 = pneg %p61
      %p262 = pneg %p58
      %p263 = pneg %p82
      %p264 = pneg %p79
      %p265 = pneg %p103
      %p266 = pneg %p100
      %p267 = pneg %p124
      %p268 = pneg %p121
      %p269 = scmp.lt.s32.totalorder %s19, 3
      %s270 = scalar_select %p269, %s19, 3
      %s271 = scalar_lea.vmem %s5, %s270
      %p272 = pneg %p150
      %p273 = pneg %p147
      %p274 = pneg %p176
      %p275 = pneg %p173
      %p276 = scmp.lt.s32.totalorder %s19, 3
      %s277 = scalar_select %p276, %s19, 3
      %s278 = smul.addr %s277, 2
      %s279 = scalar_lea.vmem %s6, %s278
      %p280 = pneg %p202
      %p281 = pneg %p199
      %p282 = scmp.lt.s32.totalorder %s19, 3
      %s283 = scalar_select %p282, %s19, 3
      %s284 = smul.addr %s283, 2
      %s285 = scalar_lea.vmem %s7, %s284
      %p286 = scmp.lt.s32.totalorder %s19, 3
      %s287 = scalar_select %p286, %s19, 3
      %s288 = smul.addr %s287, 30
      %s289 = smul.addr %s288, 4
      %s290 = scalar_lea.vmem %s0, %s289
      %p291 = scmp.lt.s32.totalorder %s19, 3
      %s292 = scalar_select %p291, %s19, 3
      %s293 = scalar_lea.vmem %s5, %s292
      %p294 = scmp.lt.s32.totalorder %s19, 3
      %s295 = scalar_select %p294, %s19, 3
      %s296 = smul.addr %s295, 2
      %s297 = scalar_lea.vmem %s6, %s296
      %p298 = scmp.lt.s32.totalorder %s19, 3
      %s299 = scalar_select %p298, %s19, 3
      %s300 = smul.addr %s299, 2
      %s301 = scalar_lea.vmem %s7, %s300
      %v303 = vld [vmem:[%s290] sm:$0xf]
      %v304 = vld [vmem:[%s290 + $0x4] sm:$0xf]
      %v305 = vld [vmem:[%s290 + $0x8] sm:$0x1]
      %v306 = vld [vmem:[%s290 + $0xc] sm:$0xf]
      %v307 = vld [vmem:[%s290 + $0x10] sm:$0xf]
      %v308 = vld [vmem:[%s290 + $0x14] sm:$0x1]
      %v309 = vld [vmem:[%s290 + $0x18] sm:$0xf]
      %v310 = vld [vmem:[%s290 + $0x1c] sm:$0xf]
      %v311 = vld [vmem:[%s290 + $0x20] sm:$0x1]
      %v312 = vld [vmem:[%s290 + $0x24] sm:$0xf]
      %v313 = vld [vmem:[%s290 + $0x28] sm:$0xf]
      %v314 = vld [vmem:[%s290 + $0x2c] sm:$0x1]
      %v315 = vld [vmem:[%s290 + $0x30] sm:$0xf]
      %v316 = vld [vmem:[%s290 + $0x34] sm:$0xf]
      %v317 = vld [vmem:[%s290 + $0x38] sm:$0x1]
      %v318 = vld [vmem:[%s290 + $0x3c] sm:$0xf]
      %v319 = vld [vmem:[%s290 + $0x40] sm:$0xf]
      %v320 = vld [vmem:[%s290 + $0x44] sm:$0x1]
      %v321 = vld [vmem:[%s290 + $0x48] sm:$0xf]
      %v322 = vld [vmem:[%s290 + $0x4c] sm:$0xf]
      %v323 = vld [vmem:[%s290 + $0x50] sm:$0x1]
      %v324 = vld [vmem:[%s290 + $0x54] sm:$0xf]
      %v325 = vld [vmem:[%s290 + $0x58] sm:$0xf]
      %v326 = vld [vmem:[%s290 + $0x5c] sm:$0x1]
      %v327 = vld [vmem:[%s290 + $0x60] sm:$0xf]
      %v328 = vld [vmem:[%s290 + $0x64] sm:$0xf]
      %v329 = vld [vmem:[%s290 + $0x68] sm:$0x1]
      %v330 = vld [vmem:[%s290 + $0x6c] sm:$0xf]
      %v331 = vld [vmem:[%s290 + $0x70] sm:$0xf]
      %v332 = vld [vmem:[%s290 + $0x74] sm:$0x1]
      %v333 = vunpack.c.l.bf16 %v303
      %v334 = vunpack.c.l.bf16 %v304
      %v335 = vunpack.c.l.bf16 %v305
      %v336 = vunpack.c.l.bf16 %v306
      %v337 = vunpack.c.l.bf16 %v307
      %v338 = vunpack.c.l.bf16 %v308
      %v339 = vunpack.c.l.bf16 %v309
      %v340 = vunpack.c.l.bf16 %v310
      %v341 = vunpack.c.l.bf16 %v311
      %v342 = vunpack.c.l.bf16 %v312
      %v343 = vunpack.c.l.bf16 %v313
      %v344 = vunpack.c.l.bf16 %v314
      %v345 = vunpack.c.l.bf16 %v315
      %v346 = vunpack.c.l.bf16 %v316
      %v347 = vunpack.c.l.bf16 %v317
      %v348 = vunpack.c.l.bf16 %v318
      %v349 = vunpack.c.l.bf16 %v319
      %v350 = vunpack.c.l.bf16 %v320
      %v351 = vunpack.c.l.bf16 %v321
      %v352 = vunpack.c.l.bf16 %v322
      %v353 = vunpack.c.l.bf16 %v323
      %v354 = vunpack.c.l.bf16 %v324
      %v355 = vunpack.c.l.bf16 %v325
      %v356 = vunpack.c.l.bf16 %v326
      %v357 = vunpack.c.l.bf16 %v327
      %v358 = vunpack.c.l.bf16 %v328
      %v359 = vunpack.c.l.bf16 %v329
      %v360 = vunpack.c.l.bf16 %v330
      %v361 = vunpack.c.l.bf16 %v331
      %v362 = vunpack.c.l.bf16 %v332
      %vm387 = vcmask 1046528
      %v388 = vrot.slane %v333, 1
      %v389 = vrot.slane %v334, 1
      %v390 = vsel %vm387, %v388, %v389
      %v391 = vrot.slane %v335, 1
      %v392 = vsel %vm387, %v389, %v391
      %v393 = vrot.slane %v336, 1
      %v394 = vrot.slane %v337, 1
      %v395 = vsel %vm387, %v393, %v394
      %v396 = vrot.slane %v338, 1
      %v397 = vsel %vm387, %v394, %v396
      %v398 = vrot.slane %v339, 1
      %v399 = vrot.slane %v340, 1
      %v400 = vsel %vm387, %v398, %v399
      %v401 = vrot.slane %v341, 1
      %v402 = vsel %vm387, %v399, %v401
      %v403 = vrot.slane %v342, 1
      %v404 = vrot.slane %v343, 1
      %v405 = vsel %vm387, %v403, %v404
      %v406 = vrot.slane %v344, 1
      %v407 = vsel %vm387, %v404, %v406
      %v408 = vrot.slane %v345, 1
      %v409 = vrot.slane %v346, 1
      %v410 = vsel %vm387, %v408, %v409
      %v411 = vrot.slane %v347, 1
      %v412 = vsel %vm387, %v409, %v411
      %v413 = vrot.slane %v348, 1
      %v414 = vrot.slane %v349, 1
      %v415 = vsel %vm387, %v413, %v414
      %v416 = vrot.slane %v350, 1
      %v417 = vsel %vm387, %v414, %v416
      %v418 = vrot.slane %v351, 1
      %v419 = vrot.slane %v352, 1
      %v420 = vsel %vm387, %v418, %v419
      %v421 = vrot.slane %v353, 1
      %v422 = vsel %vm387, %v419, %v421
      %v423 = vrot.slane %v354, 1
      %v424 = vrot.slane %v355, 1
      %v425 = vsel %vm387, %v423, %v424
      %v426 = vrot.slane %v356, 1
      %v427 = vsel %vm387, %v424, %v426
      %428 = vrot.lane.b32.xlu0 %v390, 4
      %v429 = vpop.permute.xlu0 %428
      %430 = vrot.lane.b32.xlu0 %v392, 4
      %v431 = vpop.permute.xlu0 %430
      %432 = vrot.lane.b32.xlu0 %v395, 4
      %v433 = vpop.permute.xlu0 %432
      %434 = vrot.lane.b32.xlu0 %v397, 4
      %v435 = vpop.permute.xlu0 %434
      %436 = vrot.lane.b32.xlu0 %v400, 4
      %v437 = vpop.permute.xlu0 %436
      %438 = vrot.lane.b32.xlu0 %v402, 4
      %v439 = vpop.permute.xlu0 %438
      %440 = vrot.lane.b32.xlu0 %v405, 4
      %v441 = vpop.permute.xlu0 %440
      %442 = vrot.lane.b32.xlu0 %v407, 4
      %v443 = vpop.permute.xlu0 %442
      %444 = vrot.lane.b32.xlu0 %v410, 4
      %v445 = vpop.permute.xlu0 %444
      %446 = vrot.lane.b32.xlu0 %v412, 4
      %v447 = vpop.permute.xlu0 %446
      %448 = vrot.lane.b32.xlu0 %v415, 4
      %v449 = vpop.permute.xlu0 %448
      %450 = vrot.lane.b32.xlu0 %v417, 4
      %v451 = vpop.permute.xlu0 %450
      %452 = vrot.lane.b32.xlu0 %v420, 4
      %v453 = vpop.permute.xlu0 %452
      %454 = vrot.lane.b32.xlu0 %v422, 4
      %v455 = vpop.permute.xlu0 %454
      %456 = vrot.lane.b32.xlu0 %v425, 4
      %v457 = vpop.permute.xlu0 %456
      %458 = vrot.lane.b32.xlu0 %v427, 4
      %v459 = vpop.permute.xlu0 %458
      %vm476 = vcmask 1045504
      %v477 = vrot.slane %v333, 2
      %v478 = vrot.slane %v334, 2
      %v479 = vsel %vm476, %v477, %v478
      %v480 = vrot.slane %v335, 2
      %v481 = vsel %vm476, %v478, %v480
      %v482 = vrot.slane %v336, 2
      %v483 = vrot.slane %v337, 2
      %v484 = vsel %vm476, %v482, %v483
      %v485 = vrot.slane %v338, 2
      %v486 = vsel %vm476, %v483, %v485
      %v487 = vrot.slane %v339, 2
      %v488 = vrot.slane %v340, 2
      %v489 = vsel %vm476, %v487, %v488
      %v490 = vrot.slane %v341, 2
      %v491 = vsel %vm476, %v488, %v490
      %v492 = vrot.slane %v342, 2
      %v493 = vrot.slane %v343, 2
      %v494 = vsel %vm476, %v492, %v493
      %v495 = vrot.slane %v344, 2
      %v496 = vsel %vm476, %v493, %v495
      %v497 = vrot.slane %v345, 2
      %v498 = vrot.slane %v346, 2
      %v499 = vsel %vm476, %v497, %v498
      %v500 = vrot.slane %v347, 2
      %v501 = vsel %vm476, %v498, %v500
      %v502 = vrot.slane %v348, 2
      %v503 = vrot.slane %v349, 2
      %v504 = vsel %vm476, %v502, %v503
      %v505 = vrot.slane %v350, 2
      %v506 = vsel %vm476, %v503, %v505
      %v507 = vrot.slane %v351, 2
      %v508 = vrot.slane %v352, 2
      %v509 = vsel %vm476, %v507, %v508
      %v510 = vrot.slane %v353, 2
      %v511 = vsel %vm476, %v508, %v510
      %v512 = vrot.slane %v354, 2
      %v513 = vrot.slane %v355, 2
      %v514 = vsel %vm476, %v512, %v513
      %v515 = vrot.slane %v356, 2
      %v516 = vsel %vm476, %v513, %v515
      %517 = vrot.lane.b32.xlu0 %v479, 8
      %v518 = vpop.permute.xlu0 %517
      %519 = vrot.lane.b32.xlu0 %v481, 8
      %v520 = vpop.permute.xlu0 %519
      %521 = vrot.lane.b32.xlu0 %v484, 8
      %v522 = vpop.permute.xlu0 %521
      %523 = vrot.lane.b32.xlu0 %v486, 8
      %v524 = vpop.permute.xlu0 %523
      %525 = vrot.lane.b32.xlu0 %v489, 8
      %v526 = vpop.permute.xlu0 %525
      %527 = vrot.lane.b32.xlu0 %v491, 8
      %v528 = vpop.permute.xlu0 %527
      %529 = vrot.lane.b32.xlu0 %v494, 8
      %v530 = vpop.permute.xlu0 %529
      %531 = vrot.lane.b32.xlu0 %v496, 8
      %v532 = vpop.permute.xlu0 %531
      %533 = vrot.lane.b32.xlu0 %v499, 8
      %v534 = vpop.permute.xlu0 %533
      %535 = vrot.lane.b32.xlu0 %v501, 8
      %v536 = vpop.permute.xlu0 %535
      %537 = vrot.lane.b32.xlu0 %v504, 8
      %v538 = vpop.permute.xlu0 %537
      %539 = vrot.lane.b32.xlu0 %v506, 8
      %v540 = vpop.permute.xlu0 %539
      %541 = vrot.lane.b32.xlu0 %v509, 8
      %v542 = vpop.permute.xlu0 %541
      %543 = vrot.lane.b32.xlu0 %v511, 8
      %v544 = vpop.permute.xlu0 %543
      %545 = vrot.lane.b32.xlu0 %v514, 8
      %v546 = vpop.permute.xlu0 %545
      %547 = vrot.lane.b32.xlu0 %v516, 8
      %v548 = vpop.permute.xlu0 %547
      %567 = vrot.lane.b32.xlu0 %v336, 12
      %v568 = vpop.permute.xlu0 %567
      %569 = vrot.lane.b32.xlu0 %v337, 12
      %v570 = vpop.permute.xlu0 %569
      %571 = vrot.lane.b32.xlu0 %v339, 12
      %v572 = vpop.permute.xlu0 %571
      %573 = vrot.lane.b32.xlu0 %v340, 12
      %v574 = vpop.permute.xlu0 %573
      %575 = vrot.lane.b32.xlu0 %v342, 12
      %v576 = vpop.permute.xlu0 %575
      %577 = vrot.lane.b32.xlu0 %v343, 12
      %v578 = vpop.permute.xlu0 %577
      %579 = vrot.lane.b32.xlu0 %v345, 12
      %v580 = vpop.permute.xlu0 %579
      %581 = vrot.lane.b32.xlu0 %v346, 12
      %v582 = vpop.permute.xlu0 %581
      %583 = vrot.lane.b32.xlu0 %v348, 12
      %v584 = vpop.permute.xlu0 %583
      %585 = vrot.lane.b32.xlu0 %v349, 12
      %v586 = vpop.permute.xlu0 %585
      %587 = vrot.lane.b32.xlu0 %v351, 12
      %v588 = vpop.permute.xlu0 %587
      %589 = vrot.lane.b32.xlu0 %v352, 12
      %v590 = vpop.permute.xlu0 %589
      %591 = vrot.lane.b32.xlu0 %v354, 12
      %v592 = vpop.permute.xlu0 %591
      %593 = vrot.lane.b32.xlu0 %v355, 12
      %v594 = vpop.permute.xlu0 %593
      %595 = vrot.lane.b32.xlu0 %v357, 12
      %v596 = vpop.permute.xlu0 %595
      %597 = vrot.lane.b32.xlu0 %v358, 12
      %v598 = vpop.permute.xlu0 %597
      %v616 = vrot.slane %v357, 1
      %v617 = vrot.slane %v358, 1
      %v618 = vsel %vm387, %v616, %v617
      %v619 = vrot.slane %v359, 1
      %v620 = vsel %vm387, %v617, %v619
      %621 = vrot.lane.b32.xlu0 %v395, 16
      %v622 = vpop.permute.xlu0 %621
      %623 = vrot.lane.b32.xlu0 %v397, 16
      %v624 = vpop.permute.xlu0 %623
      %625 = vrot.lane.b32.xlu0 %v400, 16
      %v626 = vpop.permute.xlu0 %625
      %627 = vrot.lane.b32.xlu0 %v402, 16
      %v628 = vpop.permute.xlu0 %627
      %629 = vrot.lane.b32.xlu0 %v405, 16
      %v630 = vpop.permute.xlu0 %629
      %631 = vrot.lane.b32.xlu0 %v407, 16
      %v632 = vpop.permute.xlu0 %631
      %633 = vrot.lane.b32.xlu0 %v410, 16
      %v634 = vpop.permute.xlu0 %633
      %635 = vrot.lane.b32.xlu0 %v412, 16
      %v636 = vpop.permute.xlu0 %635
      %637 = vrot.lane.b32.xlu0 %v415, 16
      %v638 = vpop.permute.xlu0 %637
      %639 = vrot.lane.b32.xlu0 %v417, 16
      %v640 = vpop.permute.xlu0 %639
      %641 = vrot.lane.b32.xlu0 %v420, 16
      %v642 = vpop.permute.xlu0 %641
      %643 = vrot.lane.b32.xlu0 %v422, 16
      %v644 = vpop.permute.xlu0 %643
      %645 = vrot.lane.b32.xlu0 %v425, 16
      %v646 = vpop.permute.xlu0 %645
      %647 = vrot.lane.b32.xlu0 %v427, 16
      %v648 = vpop.permute.xlu0 %647
      %649 = vrot.lane.b32.xlu0 %v618, 16
      %v650 = vpop.permute.xlu0 %649
      %651 = vrot.lane.b32.xlu0 %v620, 16
      %v652 = vpop.permute.xlu0 %651
      %v669 = vrot.slane %v357, 2
      %v670 = vrot.slane %v358, 2
      %v671 = vsel %vm476, %v669, %v670
      %v672 = vrot.slane %v359, 2
      %v673 = vsel %vm476, %v670, %v672
      %674 = vrot.lane.b32.xlu0 %v484, 20
      %v675 = vpop.permute.xlu0 %674
      %676 = vrot.lane.b32.xlu0 %v486, 20
      %v677 = vpop.permute.xlu0 %676
      %678 = vrot.lane.b32.xlu0 %v489, 20
      %v679 = vpop.permute.xlu0 %678
      %680 = vrot.lane.b32.xlu0 %v491, 20
      %v681 = vpop.permute.xlu0 %680
      %682 = vrot.lane.b32.xlu0 %v494, 20
      %v683 = vpop.permute.xlu0 %682
      %684 = vrot.lane.b32.xlu0 %v496, 20
      %v685 = vpop.permute.xlu0 %684
      %686 = vrot.lane.b32.xlu0 %v499, 20
      %v687 = vpop.permute.xlu0 %686
      %688 = vrot.lane.b32.xlu0 %v501, 20
      %v689 = vpop.permute.xlu0 %688
      %690 = vrot.lane.b32.xlu0 %v504, 20
      %v691 = vpop.permute.xlu0 %690
      %692 = vrot.lane.b32.xlu0 %v506, 20
      %v693 = vpop.permute.xlu0 %692
      %694 = vrot.lane.b32.xlu0 %v509, 20
      %v695 = vpop.permute.xlu0 %694
      %696 = vrot.lane.b32.xlu0 %v511, 20
      %v697 = vpop.permute.xlu0 %696
      %698 = vrot.lane.b32.xlu0 %v514, 20
      %v699 = vpop.permute.xlu0 %698
      %700 = vrot.lane.b32.xlu0 %v516, 20
      %v701 = vpop.permute.xlu0 %700
      %702 = vrot.lane.b32.xlu0 %v671, 20
      %v703 = vpop.permute.xlu0 %702
      %704 = vrot.lane.b32.xlu0 %v673, 20
      %v705 = vpop.permute.xlu0 %704
      %724 = vrot.lane.b32.xlu0 %v339, 24
      %v725 = vpop.permute.xlu0 %724
      %726 = vrot.lane.b32.xlu0 %v340, 24
      %v727 = vpop.permute.xlu0 %726
      %728 = vrot.lane.b32.xlu0 %v342, 24
      %v729 = vpop.permute.xlu0 %728
      %730 = vrot.lane.b32.xlu0 %v343, 24
      %v731 = vpop.permute.xlu0 %730
      %732 = vrot.lane.b32.xlu0 %v345, 24
      %v733 = vpop.permute.xlu0 %732
      %734 = vrot.lane.b32.xlu0 %v346, 24
      %v735 = vpop.permute.xlu0 %734
      %736 = vrot.lane.b32.xlu0 %v348, 24
      %v737 = vpop.permute.xlu0 %736
      %738 = vrot.lane.b32.xlu0 %v349, 24
      %v739 = vpop.permute.xlu0 %738
      %740 = vrot.lane.b32.xlu0 %v351, 24
      %v741 = vpop.permute.xlu0 %740
      %742 = vrot.lane.b32.xlu0 %v352, 24
      %v743 = vpop.permute.xlu0 %742
      %744 = vrot.lane.b32.xlu0 %v354, 24
      %v745 = vpop.permute.xlu0 %744
      %746 = vrot.lane.b32.xlu0 %v355, 24
      %v747 = vpop.permute.xlu0 %746
      %748 = vrot.lane.b32.xlu0 %v357, 24
      %v749 = vpop.permute.xlu0 %748
      %750 = vrot.lane.b32.xlu0 %v358, 24
      %v751 = vpop.permute.xlu0 %750
      %752 = vrot.lane.b32.xlu0 %v360, 24
      %v753 = vpop.permute.xlu0 %752
      %754 = vrot.lane.b32.xlu0 %v361, 24
      %v755 = vpop.permute.xlu0 %754
      %v773 = vrot.slane %v360, 1
      %v774 = vrot.slane %v361, 1
      %v775 = vsel %vm387, %v773, %v774
      %v776 = vrot.slane %v362, 1
      %v777 = vsel %vm387, %v774, %v776
      %778 = vrot.lane.b32.xlu0 %v400, 28
      %v779 = vpop.permute.xlu0 %778
      %780 = vrot.lane.b32.xlu0 %v402, 28
      %v781 = vpop.permute.xlu0 %780
      %782 = vrot.lane.b32.xlu0 %v405, 28
      %v783 = vpop.permute.xlu0 %782
      %784 = vrot.lane.b32.xlu0 %v407, 28
      %v785 = vpop.permute.xlu0 %784
      %786 = vrot.lane.b32.xlu0 %v410, 28
      %v787 = vpop.permute.xlu0 %786
      %788 = vrot.lane.b32.xlu0 %v412, 28
      %v789 = vpop.permute.xlu0 %788
      %790 = vrot.lane.b32.xlu0 %v415, 28
      %v791 = vpop.permute.xlu0 %790
      %792 = vrot.lane.b32.xlu0 %v417, 28
      %v793 = vpop.permute.xlu0 %792
      %794 = vrot.lane.b32.xlu0 %v420, 28
      %v795 = vpop.permute.xlu0 %794
      %796 = vrot.lane.b32.xlu0 %v422, 28
      %v797 = vpop.permute.xlu0 %796
      %798 = vrot.lane.b32.xlu0 %v425, 28
      %v799 = vpop.permute.xlu0 %798
      %800 = vrot.lane.b32.xlu0 %v427, 28
      %v801 = vpop.permute.xlu0 %800
      %802 = vrot.lane.b32.xlu0 %v618, 28
      %v803 = vpop.permute.xlu0 %802
      %804 = vrot.lane.b32.xlu0 %v620, 28
      %v805 = vpop.permute.xlu0 %804
      %806 = vrot.lane.b32.xlu0 %v775, 28
      %v807 = vpop.permute.xlu0 %806
      %808 = vrot.lane.b32.xlu0 %v777, 28
      %v809 = vpop.permute.xlu0 %808
      %v826 = vrot.slane %v360, 2
      %v827 = vrot.slane %v361, 2
      %v828 = vsel %vm476, %v826, %v827
      %v829 = vrot.slane %v362, 2
      %v830 = vsel %vm476, %v827, %v829
      %831 = vrot.lane.b32.xlu0 %v489, 32
      %v832 = vpop.permute.xlu0 %831
      %833 = vrot.lane.b32.xlu0 %v491, 32
      %v834 = vpop.permute.xlu0 %833
      %835 = vrot.lane.b32.xlu0 %v494, 32
      %v836 = vpop.permute.xlu0 %835
      %837 = vrot.lane.b32.xlu0 %v496, 32
      %v838 = vpop.permute.xlu0 %837
      %839 = vrot.lane.b32.xlu0 %v499, 32
      %v840 = vpop.permute.xlu0 %839
      %841 = vrot.lane.b32.xlu0 %v501, 32
      %v842 = vpop.permute.xlu0 %841
      %843 = vrot.lane.b32.xlu0 %v504, 32
      %v844 = vpop.permute.xlu0 %843
      %845 = vrot.lane.b32.xlu0 %v506, 32
      %v846 = vpop.permute.xlu0 %845
      %847 = vrot.lane.b32.xlu0 %v509, 32
      %v848 = vpop.permute.xlu0 %847
      %849 = vrot.lane.b32.xlu0 %v511, 32
      %v850 = vpop.permute.xlu0 %849
      %851 = vrot.lane.b32.xlu0 %v514, 32
      %v852 = vpop.permute.xlu0 %851
      %853 = vrot.lane.b32.xlu0 %v516, 32
      %v854 = vpop.permute.xlu0 %853
      %855 = vrot.lane.b32.xlu0 %v671, 32
      %v856 = vpop.permute.xlu0 %855
      %857 = vrot.lane.b32.xlu0 %v673, 32
      %v858 = vpop.permute.xlu0 %857
      %859 = vrot.lane.b32.xlu0 %v828, 32
      %v860 = vpop.permute.xlu0 %859
      %861 = vrot.lane.b32.xlu0 %v830, 32
      %v862 = vpop.permute.xlu0 %861
      %vm879 = vcmask 31744
      %v880 = vsel %vm879, %v333, %v429
      %v881 = vsel %vm879, %v334, %v431
      %v882 = vsel %vm879, %v336, %v433
      %v883 = vsel %vm879, %v337, %v435
      %v884 = vsel %vm879, %v339, %v437
      %v885 = vsel %vm879, %v340, %v439
      %v886 = vsel %vm879, %v342, %v441
      %v887 = vsel %vm879, %v343, %v443
      %v888 = vsel %vm879, %v345, %v445
      %v889 = vsel %vm879, %v346, %v447
      %v890 = vsel %vm879, %v348, %v449
      %v891 = vsel %vm879, %v349, %v451
      %v892 = vsel %vm879, %v351, %v453
      %v893 = vsel %vm879, %v352, %v455
      %v894 = vsel %vm879, %v354, %v457
      %v895 = vsel %vm879, %v355, %v459
      %vm896 = vcmask 64512
      %v897 = vsel %vm896, %v880, %v518
      %v898 = vsel %vm896, %v881, %v520
      %v899 = vsel %vm896, %v882, %v522
      %v900 = vsel %vm896, %v883, %v524
      %v901 = vsel %vm896, %v884, %v526
      %v902 = vsel %vm896, %v885, %v528
      %v903 = vsel %vm896, %v886, %v530
      %v904 = vsel %vm896, %v887, %v532
      %v905 = vsel %vm896, %v888, %v534
      %v906 = vsel %vm896, %v889, %v536
      %v907 = vsel %vm896, %v890, %v538
      %v908 = vsel %vm896, %v891, %v540
      %v909 = vsel %vm896, %v892, %v542
      %v910 = vsel %vm896, %v893, %v544
      %v911 = vsel %vm896, %v894, %v546
      %v912 = vsel %vm896, %v895, %v548
      %vm913 = vcmask 97280
      %v914 = vsel %vm913, %v897, %v568
      %v915 = vsel %vm913, %v898, %v570
      %v916 = vsel %vm913, %v899, %v572
      %v917 = vsel %vm913, %v900, %v574
      %v918 = vsel %vm913, %v901, %v576
      %v919 = vsel %vm913, %v902, %v578
      %v920 = vsel %vm913, %v903, %v580
      %v921 = vsel %vm913, %v904, %v582
      %v922 = vsel %vm913, %v905, %v584
      %v923 = vsel %vm913, %v906, %v586
      %v924 = vsel %vm913, %v907, %v588
      %v925 = vsel %vm913, %v908, %v590
      %v926 = vsel %vm913, %v909, %v592
      %v927 = vsel %vm913, %v910, %v594
      %v928 = vsel %vm913, %v911, %v596
      %v929 = vsel %vm913, %v912, %v598
      %vm930 = vcmask 130048
      %v931 = vsel %vm930, %v914, %v622
      %v932 = vsel %vm930, %v915, %v624
      %v933 = vsel %vm930, %v916, %v626
      %v934 = vsel %vm930, %v917, %v628
      %v935 = vsel %vm930, %v918, %v630
      %v936 = vsel %vm930, %v919, %v632
      %v937 = vsel %vm930, %v920, %v634
      %v938 = vsel %vm930, %v921, %v636
      %v939 = vsel %vm930, %v922, %v638
      %v940 = vsel %vm930, %v923, %v640
      %v941 = vsel %vm930, %v924, %v642
      %v942 = vsel %vm930, %v925, %v644
      %v943 = vsel %vm930, %v926, %v646
      %v944 = vsel %vm930, %v927, %v648
      %v945 = vsel %vm930, %v928, %v650
      %v946 = vsel %vm930, %v929, %v652
      %vm947 = vcmask 162816
      %v948 = vsel %vm947, %v931, %v675
      %v949 = vsel %vm947, %v932, %v677
      %v950 = vsel %vm947, %v933, %v679
      %v951 = vsel %vm947, %v934, %v681
      %v952 = vsel %vm947, %v935, %v683
      %v953 = vsel %vm947, %v936, %v685
      %v954 = vsel %vm947, %v937, %v687
      %v955 = vsel %vm947, %v938, %v689
      %v956 = vsel %vm947, %v939, %v691
      %v957 = vsel %vm947, %v940, %v693
      %v958 = vsel %vm947, %v941, %v695
      %v959 = vsel %vm947, %v942, %v697
      %v960 = vsel %vm947, %v943, %v699
      %v961 = vsel %vm947, %v944, %v701
      %v962 = vsel %vm947, %v945, %v703
      %v963 = vsel %vm947, %v946, %v705
      %vm964 = vcmask 195584
      %v965 = vsel %vm964, %v948, %v725
      %v966 = vsel %vm964, %v949, %v727
      %v967 = vsel %vm964, %v950, %v729
      %v968 = vsel %vm964, %v951, %v731
      %v969 = vsel %vm964, %v952, %v733
      %v970 = vsel %vm964, %v953, %v735
      %v971 = vsel %vm964, %v954, %v737
      %v972 = vsel %vm964, %v955, %v739
      %v973 = vsel %vm964, %v956, %v741
      %v974 = vsel %vm964, %v957, %v743
      %v975 = vsel %vm964, %v958, %v745
      %v976 = vsel %vm964, %v959, %v747
      %v977 = vsel %vm964, %v960, %v749
      %v978 = vsel %vm964, %v961, %v751
      %v979 = vsel %vm964, %v962, %v753
      %v980 = vsel %vm964, %v963, %v755
      %vm981 = vcmask 228352
      %v982 = vsel %vm981, %v965, %v779
      %v983 = vsel %vm981, %v966, %v781
      %v984 = vsel %vm981, %v967, %v783
      %v985 = vsel %vm981, %v968, %v785
      %v986 = vsel %vm981, %v969, %v787
      %v987 = vsel %vm981, %v970, %v789
      %v988 = vsel %vm981, %v971, %v791
      %v989 = vsel %vm981, %v972, %v793
      %v990 = vsel %vm981, %v973, %v795
      %v991 = vsel %vm981, %v974, %v797
      %v992 = vsel %vm981, %v975, %v799
      %v993 = vsel %vm981, %v976, %v801
      %v994 = vsel %vm981, %v977, %v803
      %v995 = vsel %vm981, %v978, %v805
      %v996 = vsel %vm981, %v979, %v807
      %v997 = vsel %vm981, %v980, %v809
      %vm998 = vcmask 261120
      %v999 = vsel %vm998, %v982, %v832
      %v1000 = vsel %vm998, %v983, %v834
      %v1001 = vsel %vm998, %v984, %v836
      %v1002 = vsel %vm998, %v985, %v838
      %v1003 = vsel %vm998, %v986, %v840
      %v1004 = vsel %vm998, %v987, %v842
      %v1005 = vsel %vm998, %v988, %v844
      %v1006 = vsel %vm998, %v989, %v846
      %v1007 = vsel %vm998, %v990, %v848
      %v1008 = vsel %vm998, %v991, %v850
      %v1009 = vsel %vm998, %v992, %v852
      %v1010 = vsel %vm998, %v993, %v854
      %v1011 = vsel %vm998, %v994, %v856
      %v1012 = vsel %vm998, %v995, %v858
      %v1013 = vsel %vm998, %v996, %v860
      %v1014 = vsel %vm998, %v997, %v862
      %v1015 = vpack.c.bf16 %v1000, %v999
      %v1016 = vpack.c.bf16 %v1002, %v1001
      %v1017 = vpack.c.bf16 %v1004, %v1003
      %v1018 = vpack.c.bf16 %v1006, %v1005
      %v1019 = vpack.c.bf16 %v1008, %v1007
      %v1020 = vpack.c.bf16 %v1010, %v1009
      %v1021 = vpack.c.bf16 %v1012, %v1011
      %v1022 = vpack.c.bf16 %v1014, %v1013
      %v1023 = vld [vmem:[%s1] sm:$0xf]
      %v1024 = vld [vmem:[%s1 + $0x4] sm:$0xf]
      %v1025 = vld [vmem:[%s1 + $0x8] sm:$0xf]
      %v1026 = vld [vmem:[%s1 + $0xc] sm:$0xf]
      %v1027 = vld [vmem:[%s1 + $0x10] sm:$0x3]
      %v1028 = vld [vmem:[%s2] sm:$0x1]
      %v1030 = vperm.slane %v1028, 0
      %v1037 = vunpack.c.l.b16 %v1023
      %v1038 = vunpack.c.l.b16 %v1024
      %v1039 = vunpack.c.l.b16 %v1025
      %v1040 = vunpack.c.l.b16 %v1026
      %v1041 = vunpack.c.l.b16 %v1027
      %v1042 = vpack.c.b16 %v1038, %v1037
      %v1043 = vpack.c.b16 %v1040, %v1039
      %v1044 = vpack.c.b16 %v1041, %v1041
      %vm1047 = vcmask 293888
      %v1049 = vsel %vm1047, %v1015, 0
      %v1052 = vsel %vm1047, %v1016, 0
      %v1055 = vsel %vm1047, %v1017, 0
      %v1058 = vsel %vm1047, %v1018, 0
      %v1061 = vsel %vm1047, %v1019, 0
      %v1064 = vsel %vm1047, %v1020, 0
      %v1067 = vsel %vm1047, %v1021, 0
      %v1070 = vsel %vm1047, %v1022, 0
      %vm1072 = vcmask 1041408
      %v1074 = vsel %vm1072, %v1044, 0
      %1076 = vmatpush.bf16.msra.mxu0 0
      %1077 = vmatpush.bf16.msra.mxu0 0
      %1078 = vmatpush.bf16.msra.mxu0 0
      %1079 = vmatpush.bf16.msra.mxu0 0
      %1080 = vmatpush.bf16.msra.mxu0 0
      %1081 = vmatpush.bf16.msra.mxu0 %v1074
      %1082 = vmatpush.bf16.msra.mxu0 %v1043
      %1083 = vmatpush.bf16.msra.mxu0 %v1042
      %1084 = vmatmul.bf16.gmra.mxu0 %v1049
      %v1085 = vpop.f32.mrf.mxu0
      %v1086 = vadd.f32 %v1030, %v1085
      %v1087 = vpop.f32.mrf.mxu0
      %v1088 = vadd.f32 %v1030, %v1087
      %1089 = vmatmul.bf16.gmra.mxu0 %v1052
      %v1090 = vpop.f32.mrf.mxu0
      %v1091 = vadd.f32 %v1030, %v1090
      %v1092 = vpop.f32.mrf.mxu0
      %v1093 = vadd.f32 %v1030, %v1092
      %1094 = vmatmul.bf16.gmra.mxu0 %v1055
      %v1095 = vpop.f32.mrf.mxu0
      %v1096 = vadd.f32 %v1030, %v1095
      %v1097 = vpop.f32.mrf.mxu0
      %v1098 = vadd.f32 %v1030, %v1097
      %1099 = vmatmul.bf16.gmra.mxu0 %v1058
      %v1100 = vpop.f32.mrf.mxu0
      %v1101 = vadd.f32 %v1030, %v1100
      %v1102 = vpop.f32.mrf.mxu0
      %v1103 = vadd.f32 %v1030, %v1102
      %1104 = vmatmul.bf16.gmra.mxu0 %v1061
      %v1105 = vpop.f32.mrf.mxu0
      %v1106 = vadd.f32 %v1030, %v1105
      %v1107 = vpop.f32.mrf.mxu0
      %v1108 = vadd.f32 %v1030, %v1107
      %1109 = vmatmul.bf16.gmra.mxu0 %v1064
      %v1110 = vpop.f32.mrf.mxu0
      %v1111 = vadd.f32 %v1030, %v1110
      %v1112 = vpop.f32.mrf.mxu0
      %v1113 = vadd.f32 %v1030, %v1112
      %1114 = vmatmul.bf16.gmra.mxu0 %v1067
      %v1115 = vpop.f32.mrf.mxu0
      %v1116 = vadd.f32 %v1030, %v1115
      %v1117 = vpop.f32.mrf.mxu0
      %v1118 = vadd.f32 %v1030, %v1117
      %1119 = vmatmul.bf16.gmra.mxu0 %v1070
      %v1120 = vpop.f32.mrf.mxu0
      %v1121 = vadd.f32 %v1030, %v1120
      %v1122 = vpop.f32.mrf.mxu0
      %v1123 = vadd.f32 %v1030, %v1122
      %1124 = vdwg.mxu0
      %v1125 = vmax.f32 %v1086, 0.0
      %v1126 = vmax.f32 %v1088, 0.0
      %v1127 = vmax.f32 %v1091, 0.0
      %v1128 = vmax.f32 %v1093, 0.0
      %v1129 = vmax.f32 %v1096, 0.0
      %v1130 = vmax.f32 %v1098, 0.0
      %v1131 = vmax.f32 %v1101, 0.0
      %v1132 = vmax.f32 %v1103, 0.0
      %v1133 = vmax.f32 %v1106, 0.0
      %v1134 = vmax.f32 %v1108, 0.0
      %v1135 = vmax.f32 %v1111, 0.0
      %v1136 = vmax.f32 %v1113, 0.0
      %v1137 = vmax.f32 %v1116, 0.0
      %v1138 = vmax.f32 %v1118, 0.0
      %v1139 = vmax.f32 %v1121, 0.0
      %v1140 = vmax.f32 %v1123, 0.0
      %v1141 = vpack.c.bf16 %v1126, %v1125
      %v1142 = vpack.c.bf16 %v1128, %v1127
      %v1143 = vpack.c.bf16 %v1130, %v1129
      %v1144 = vpack.c.bf16 %v1132, %v1131
      %v1145 = vpack.c.bf16 %v1134, %v1133
      %v1146 = vpack.c.bf16 %v1136, %v1135
      %v1147 = vpack.c.bf16 %v1138, %v1137
      %v1148 = vpack.c.bf16 %v1140, %v1139
      %v1149 = vld [vmem:[%s3] sm:$0x1]
      %v1150 = vld [vmem:[%s4] sm:$0x3]
      %1152 = vset.pattern.permute.xlu0 0
      %1153 = vperm.xlu0 %1152, %v1150
      %v1154 = vpop.permute.xlu0 %1153
      %v1157 = vsel %vm998, %v1149, 0
      %v1160 = vsel %vm998, %v1141, 0
      %v1163 = vsel %vm998, %v1142, 0
      %v1166 = vsel %vm998, %v1143, 0
      %v1169 = vsel %vm998, %v1144, 0
      %v1172 = vsel %vm998, %v1145, 0
      %v1175 = vsel %vm998, %v1146, 0
      %v1178 = vsel %vm998, %v1147, 0
      %v1181 = vsel %vm998, %v1148, 0
      %1183 = vmatpush.bf16.xpose.msra.mxu0 %v1181
      %1184 = vmatpush.bf16.xpose.msra.mxu0 %v1178
      %1185 = vmatpush.bf16.xpose.msra.mxu0 %v1175
      %1186 = vmatpush.bf16.xpose.msra.mxu0 %v1172
      %1187 = vmatpush.bf16.xpose.msra.mxu0 %v1169
      %1188 = vmatpush.bf16.xpose.msra.mxu0 %v1166
      %1189 = vmatpush.bf16.xpose.msra.mxu0 %v1163
      %1190 = vmatpush.bf16.xpose.msra.mxu0 %v1160
      %1191 = vmatmul.bf16.gmra.mxu0 %v1157
      %v1192 = vpop.f32.mrf.mxu0
      %v1193 = vadd.f32 %v1154, %v1192
      %v1194 = vpop.f32.mrf.mxu0
      %1195 = vdwg.mxu0
      %1196 = vst [vmem:[%s297] sm:$0x3] %v1193
      %v1197 = vld [vmem:[%s293] sm:$0x1]
      %v1198 = vunpack.c.l.bf16 %v1197
      %v1199 = vsub.f32 %v1193, %v1198
      %v1200 = vmul.f32 %v1199, %v1199
      %v1201 = vsel %vm1072, %v1200, 0.0
      %1202 = vadd.xlane.f32.xlu0 %v1201
      %v1203 = vpop.xlane.xlu0 %1202
      %vm1204 = vcmask 1024
      %1205 = vst.msk [vmem:[%s301] sm:$0x3] %vm1204, %v1203
      %p1206 = scmp.lt.s32.totalorder %s19, 3
      %s1207 = scalar_select %p1206, %s19, 3
      %s1208 = smul.addr %s1207, 2
      %s1209 = scalar_lea.vmem %s6, %s1208
      %p1210 = scmp.lt.s32.totalorder %s19, 3
      %s1211 = scalar_select %p1210, %s19, 3
      %s1212 = smul.addr %s1211, 2
      %s1213 = scalar_lea.vmem %s7, %s1212
      // Predicated region
      $region45: #{mtr_net_forward.1} parent=43 // pred_check
        %p1214 = pneg %p173
      $region46: #{mtr_net_forward.1} parent=43 // pred_check_branch
        %1216 = sbr.rel (%p1214) target = $region48
      $region47: #{mtr_net_forward.1} parent=43 // pred_region
        _
      $region48: #{mtr_net_forward.1} parent=43 // pred_fallthru
        _
      // Predicated region
      $region49: #{mtr_net_forward.1} parent=43 // pred_check
        %p1217 = pneg %p199
      $region50: #{mtr_net_forward.1} parent=43 // pred_check_branch
        %1219 = sbr.rel (%p1217) target = $region52
      $region51: #{mtr_net_forward.1} parent=43 // pred_region
        _
      $region52: #{mtr_net_forward.1} parent=43 // pred_fallthru
        _
    $region44: #{mtr_net_forward.1} parent=5 // pred_fallthru
      _
    %p1220 = scmp.le.s32.totalorder 2, %s14
    // Predicated region
    $region53: #{mtr_net_forward.1} parent=5 // pred_check
      %p1221 = pneg %p1220
    $region54: #{mtr_net_forward.1} parent=5 // pred_check_branch
      %1223 = sbr.rel (%p1221) target = $region56
    $region55: #{mtr_net_forward.1} parent=5 // pred_region
      %s1224 = ssub.s32 %s14, 2
      // Predicated region
      $region57: #{mtr_net_forward.1} parent=55 // pred_check
        %p1225 = pneg %p179
      $region58: #{mtr_net_forward.1} parent=55 // pred_check_branch
        %1227 = sbr.rel (%p1225) target = $region60
      $region59: #{mtr_net_forward.1} parent=55 // pred_region
        %p1228 = scmp.lt.s32.totalorder %s20, 3
        %s1229 = scalar_select %p1228, %s20, 3
        %s1230 = smul.addr %s1229, 2
        %s1231 = scalar_lea.vmem %s6, %s1230
      $region60: #{mtr_net_forward.1} parent=55 // pred_fallthru
        _
      // Predicated region
      $region61: #{mtr_net_forward.1} parent=55 // pred_check
        %p1232 = pneg %p205
      $region62: #{mtr_net_forward.1} parent=55 // pred_check_branch
        %1234 = sbr.rel (%p1232) target = $region64
      $region63: #{mtr_net_forward.1} parent=55 // pred_region
        %p1235 = scmp.lt.s32.totalorder %s20, 3
        %s1236 = scalar_select %p1235, %s20, 3
        %s1237 = smul.addr %s1236, 2
        %s1238 = scalar_lea.vmem %s7, %s1237
      $region64: #{mtr_net_forward.1} parent=55 // pred_fallthru
        _
    $region56: #{mtr_net_forward.1} parent=5 // pred_fallthru
      _
  $region6: #{mtr_net_forward.1} parent=0 // loop_footer
    %s18 = sadd.s32 1, %s14
  $region7: #{mtr_net_forward.1} parent=0 // loop_footer_branch
    %13 = sbr.rel target = $region3
  $region8: #{mtr_net_forward.1} parent=0 // loop_exit
    _

</llo_original>
